<compile_context>
chip_gen: v7x
topology: tpu7x:2x2x1
jax: 0.10.0
libtpu: 0.0.40
codegen_flags: <defaults>
</compile_context>

<pallas_src>
import functools

import jax
import jax.numpy as jnp
from jax.experimental import pallas as pl
from jax.experimental.pallas import tpu as pltpu


_LANE = 128
_MAX_BLOCK_BYTES = 8 * 1024 * 1024       # upper bound on a single pipeline block
_MIN_SPLIT_BYTES = 2 * 1024 * 1024       # above this, force >=2 grid steps (v7x megacore)


def _ceil_div(a, b):
    return -(-a // b)


@functools.lru_cache(maxsize=None)
def _vmem_capacity_bytes():
    """Per-TensorCore VMEM capacity (128 MiB v5e/v6e, 64 MiB v7x); safe fallback."""
    try:
        cap = getattr(pltpu.get_tpu_info(), "vmem_capacity_bytes", None)
        if cap:
            return int(cap)
    except Exception:
        pass
    return 64 * 1024 * 1024               # conservative: v7x per-TC VMEM


def _block_budget_bytes():
    # ~4x this (double-buffered in + out) plus compiler scratch must fit in scoped VMEM.
    return int(min(_MAX_BLOCK_BYTES, _vmem_capacity_bytes() // 12))


# ----------------------------- Pallas kernel ---------------------------------

def _sparsify_kernel(th_ref, x_ref, o_ref):
    """Zero out values with |x| <= threshold.

    th_ref : SMEM (1,) float32 scalar threshold (may be -inf -> identity).
    x_ref  : VMEM tile of the flattened activation tensor (2-D slab or 1-D ragged slab).
    o_ref  : VMEM output tile of the same shape.
    """
    th = th_ref[0]
    x = x_ref[...]
    # Compare in float32: |x| upcasts exactly (bf16/fp8 -> f32 is exact), and the stored
    # threshold value is already representable in x.dtype, so this matches torch exactly
    # while avoiding any extra rounding of the threshold.
    mask = jnp.abs(x).astype(jnp.float32) <= th
    o_ref[...] = jnp.where(mask, jnp.zeros_like(x), x)


# ----------------------------- tiling helpers --------------------------------

def _pick_width(total):
    """Widest lane-dense slab width (any multiple of 128, <= 8192) dividing the count."""
    cap = min(8192, total)
    cap -= cap % _LANE
    for w in range(cap, _LANE - 1, -_LANE):
        if total % w == 0:
            return w
    return None


def _pick_block_rows(nrows, width, itemsize, block_bytes):
    """Rows per block: ~block_bytes sized, sublane-granular, >=2 grid steps when large."""
    sub = {1: 32, 2: 16, 4: 8}.get(itemsize, 8)
    row_bytes = width * itemsize
    slab_bytes = nrows * row_bytes
    if slab_bytes <= min(_MIN_SPLIT_BYTES, block_bytes):
        return nrows                                        # single full-extent block
    max_rows = max((block_bytes // row_bytes) // sub * sub, sub)
    nsteps = max(2, _ceil_div(nrows, max_rows))             # >=2: both v7x TCs stream
    if nsteps % 2:
        nsteps += 1                                         # balance the two cores
    rows = _ceil_div(_ceil_div(nrows, nsteps), sub) * sub
    return min(rows, nrows)


def _pick_block_elems(total, itemsize, block_bytes):
    """Block length for the 1-D ragged path (multiple of 8*128); partial tail is masked."""
    gran = 8 * _LANE
    if total * itemsize <= min(_MIN_SPLIT_BYTES, block_bytes):
        return total                                        # single full-extent block
    max_elems = max((block_bytes // itemsize) // gran * gran, gran)
    nsteps = max(2, _ceil_div(total, max_elems))
    if nsteps % 2:
        nsteps += 1
    elems = _ceil_div(_ceil_div(total, nsteps), gran) * gran
    return min(elems, total)


# ------------------------------ host wrapper ----------------------------------

@functools.partial(jax.jit, static_argnames=("max_block_bytes",))
def _sparsify_pallas(x, threshold, *, max_block_bytes=None):
    """Apply the masking kernel to an arbitrarily shaped tensor (one HBM read + write)."""
    orig_shape = x.shape
    total = int(x.size)
    itemsize = x.dtype.itemsize
    if total == 0:
        return x

    th = jnp.reshape(threshold, (1,)).astype(jnp.float32)
    block_bytes = _block_budget_bytes() if max_block_bytes is None else int(max_block_bytes)

    width = _pick_width(total)
    if width is not None:
        # Common path: zero-copy reshape to a wide lane-dense 2-D slab.
        xf = x.reshape(-1, width)
        nrows = xf.shape[0]
        block_rows = _pick_block_rows(nrows, width, itemsize, block_bytes)
        grid = (_ceil_div(nrows, block_rows),)
        block_shape = (block_rows, width)
        index_map = lambda i: (i, 0)
        blk_bytes = block_rows * width * itemsize
    else:
        # Ragged element count: zero-copy 1-D slab; Pallas masks the partial tail block.
        # No pad / post-slice round trip -> exactly 1x read + 1x write of HBM traffic.
        xf = x.reshape(-1)
        block_elems = _pick_block_elems(total, itemsize, block_bytes)
        grid = (_ceil_div(total, block_elems),)
        block_shape = (block_elems,)
        index_map = lambda i: (i,)
        blk_bytes = block_elems * itemsize

    # Allow the 4x double-buffered in+out footprint explicitly (v5e default is only 16 MiB),
    # capped well under the physical per-core VMEM (64 MiB on v7x).
    vmem_limit = int(min(_vmem_capacity_bytes() * 3 // 4, 4 * blk_bytes + (8 << 20)))

    out = pl.pallas_call(
        _sparsify_kernel,
        out_shape=jax.ShapeDtypeStruct(xf.shape, x.dtype),
        grid=grid,
        in_specs=[
            pl.BlockSpec(memory_space=pltpu.SMEM),          # scalar threshold
            pl.BlockSpec(block_shape, index_map),           # activation tile
        ],
        out_specs=pl.BlockSpec(block_shape, index_map),
        compiler_params=pltpu.CompilerParams(
            dimension_semantics=("parallel",),
            vmem_limit_bytes=vmem_limit,
        ),
    )(th, xf)

    return out.reshape(orig_shape)


# --------------------------- Module-equivalent glue ---------------------------

class ActivationsSparsifier:
    """JAX/Pallas equivalent of nncf's ActivationsSparsifier."""

    def __init__(self, target_sparsity: float, alpha: float = 0.2):
        if alpha <= 0.0 or alpha >= 1.0:
            raise ValueError("The decay factor `alpha` should be in range (0, 1).")
        self.target_sparsity = float(target_sparsity)
        self.alpha = float(alpha)
        # buffers
        self.running_threshold = jnp.array(-jnp.inf, dtype=jnp.float32)
        self.num_batches_tracked = 0
        self._freeze = True

    # --- freeze property ---
    @property
    def freeze(self):
        return self._freeze

    @freeze.setter
    def freeze(self, value: bool):
        self._freeze = bool(value)

    # --- calibration helpers (glue; quantile is sort-based) ---
    @staticmethod
    def calculate_threshold(x, target_sparsity):
        # TODO(synk): the sort-based quantile has no clean Pallas path; a streaming
        # two-pass histogram quantile kernel would be ~5-10x faster on large activations
        # but is approximate, so the exact jnp.quantile (matching torch) is kept.
        return jnp.quantile(jnp.abs(x).astype(jnp.float32).reshape(-1),
                            target_sparsity, axis=0)

    def _update(self, threshold, dtype):
        # TODO(synk): torch accumulates in float64; TPU has no native f64, so float32 is
        # used (drift ~1e-6 rel. over many calibration batches).
        threshold = jnp.asarray(threshold, dtype=jnp.float32)
        if self.num_batches_tracked == 0:
            running = threshold
        else:
            beta = 1.0 - self.alpha
            old = jnp.asarray(self.running_threshold, dtype=jnp.float32)
            n = self.num_batches_tracked
            running = (threshold * self.alpha
                       + old * beta * (1.0 - beta ** n)) / (1.0 - beta ** (n + 1))
        # torch stores the running threshold in the activation dtype (`.type(dtype)`).
        self.running_threshold = running.astype(dtype)
        self.num_batches_tracked += 1
        return self.running_threshold

    def reset_running_stats(self):
        self.running_threshold = jnp.array(-jnp.inf, dtype=jnp.float32)
        self.num_batches_tracked = 0

    def extra_repr(self) -> str:
        return f"target_sparsity={self.target_sparsity}"

    # --- forward ---
    def __call__(self, x):
        if not self._freeze:
            threshold = self.calculate_threshold(x, self.target_sparsity)
            self._update(threshold, x.dtype)
        if self._freeze and self.num_batches_tracked == 0:
            # running_threshold is still -inf: masking is an exact no-op, skip the
            # full HBM read+write entirely (pure host-side check, no device sync).
            return x
        return _sparsify_pallas(x, self.running_threshold)


# --------------------------------- demo ---------------------------------------

def _reference_forward(x, running_threshold):
    th = jnp.asarray(running_threshold, dtype=jnp.float32)
    mask = jnp.abs(x).astype(jnp.float32) <= th
    return jnp.where(mask, jnp.zeros_like(x), x)


if __name__ == "__main__":
    key = jax.random.PRNGKey(0)
    # NCHW activation, like a conv input in the original module's usage.
    x = jax.random.normal(key, (2, 4, 16, 16), dtype=jnp.float32)

    sparsifier = ActivationsSparsifier(target_sparsity=0.5, alpha=0.2)

    # 1) frozen path: running_threshold = -inf -> identity (short-circuited in Python)
    y_frozen = sparsifier(x)
    jax.block_until_ready(y_frozen)
    assert jnp.array_equal(y_frozen, x), "frozen path should be identity"

    # 2) calibration path: quantile threshold, EMA update, then mask (runs the kernel)
    sparsifier.freeze = False
    y1 = sparsifier(x)
    y2 = sparsifier(x * 1.5)   # second batch exercises the EMA branch
    jax.block_until_ready(y2)

    ref = _reference_forward(x * 1.5, sparsifier.running_threshold)
    assert jnp.array_equal(y2, ref), "pallas masking mismatch vs reference"

    achieved = float(jnp.mean((y1 == 0.0).astype(jnp.float32)))
    assert abs(achieved - 0.5) < 0.05, f"unexpected sparsity {achieved}"

    # 3) extra coverage of the tiling paths:
    #    - default-config multi-block grid with a partial last sublane block (>2 MiB slab)
    #    - bf16 (dtype-aware sublane granularity, single full-extent block)
    #    - ragged element count, single full-extent 1-D block (no pad/slice)
    #    - ragged element count, multi-block 1-D grid with a masked partial tail block
    cases = [
        ((8, 72, 32, 32), jnp.float32, None),
        ((2, 16, 16, 16), jnp.bfloat16, None),
        ((2, 3, 5, 7), jnp.float32, None),
        ((11, 13, 101), jnp.float32, 16 * 1024),
    ]
    for shape, dtype, blk in cases:
        xt = jax.random.normal(jax.random.PRNGKey(3), shape, dtype=dtype)
        th = jnp.quantile(jnp.abs(xt).astype(jnp.float32).reshape(-1), 0.5)
        got = _sparsify_pallas(xt, th, max_block_bytes=blk)
        want = _reference_forward(xt, th)
        jax.block_until_ready(got)
        assert jnp.array_equal(got, want), f"mismatch for shape {shape} dtype {dtype}"

    print("KERNEL_OK")
</pallas_src>

<mosaic_0001>
module attributes {stable_mosaic.version = 11 : i64} {
  func.func @_sparsify_kernel(%arg0: i32, %arg1: memref<1xf32, #tpu.memory_space<smem>>, %arg2: memref<1x2048xf32, #tpu.memory_space<vmem>>, %arg3: memref<1x2048xf32, #tpu.memory_space<vmem>>) attributes {dimension_semantics = [#tpu.dimension_semantics<parallel>], iteration_bounds = array<i64: 1>, scalar_prefetch = 0 : i64, scratch_operands = 0 : i64, tpu.core_type = #tpu.core_type<tc>, window_params = [{transform_indices = @transform_0, window_bounds = array<i64: 1>}, {transform_indices = @transform_1, window_bounds = array<i64: 1, 2048>}, {transform_indices = @transform_2, window_bounds = array<i64: 1, 2048>}]} {
    %c0 = arith.constant 0 : index
    %0 = memref.load %arg1[%c0] : memref<1xf32, #tpu.memory_space<smem>>
    %c0_0 = arith.constant 0 : index
    %c0_1 = arith.constant 0 : index
    %1 = vector.load %arg2[%c0_0, %c0_1] : memref<1x2048xf32, #tpu.memory_space<vmem>>, vector<1x2048xf32>
    %2 = math.absf %1 : vector<1x2048xf32>
    %3 = vector.broadcast %0 : f32 to vector<1x2048xf32>
    %4 = arith.cmpf ole, %2, %3 : vector<1x2048xf32>
    %cst = arith.constant 0.000000e+00 : f32
    %5 = vector.broadcast %cst : f32 to vector<1x2048xf32>
    %6 = arith.select %4, %5, %1 : vector<1x2048xi1>, vector<1x2048xf32>
    %c0_2 = arith.constant 0 : index
    %c0_3 = arith.constant 0 : index
    %7 = vector.load %arg3[%c0_2, %c0_3] : memref<1x2048xf32, #tpu.memory_space<vmem>>, vector<1x2048xf32>
    tpu.vector_store %arg3[%c0_2, %c0_3], %6 {strides = array<i32>} : memref<1x2048xf32, #tpu.memory_space<vmem>>, vector<1x2048xf32>,
    return
  }
  func.func @transform_0(%arg0: i32) -> i32 {
    %c0_i32 = arith.constant 0 : i32
    %c0_i32_0 = arith.constant 0 : i32
    return %c0_i32 : i32
  }
  func.func @transform_1(%arg0: i32) -> (i32, i32) {
    %c0_i32 = arith.constant 0 : i32
    %c0_i32_0 = arith.constant 0 : i32
    return %arg0, %c0_i32 : i32, i32
  }
  func.func @transform_2(%arg0: i32) -> (i32, i32) {
    %c0_i32 = arith.constant 0 : i32
    %c0_i32_0 = arith.constant 0 : i32
    return %arg0, %c0_i32 : i32, i32
  }
}

</mosaic_0001>

<llo_original>
// kernel: _sparsify_pallas.1
$region0: #{_sparsify_pallas.1}
  #allocation0 [shape = 'u32[]', space=smem, size = 0x4, offset = 0x4, fixed_abs, tag = 'smem constant byte address 0x4 - core index']
  #allocation1 [shape = 'u32[144,128]{1,0:T(1,128)}', space=vmem, size = 0x12000, scoped, tag = 'internal scratch']
  #allocation2 [shape = 'f32[1]{0:T(128)S(6)}', space=smem, size = 0x200, scoped, tag = 'scoped memory for _sparsify_pallas.1']
  %s0 = inlined_call_operand.<no memory space> [shape: f32[1], index: 0, kind: input, shape index: {}]
  %s1 = inlined_call_operand.vmem [shape: f32[1,2048], index: 1, kind: input, shape index: {}]
  %s2 = inlined_call_operand.vmem [shape: f32[1,2048], index: 2, kind: output, shape index: {}]
  %s3 = sld [smem:[#allocation0]]
  $region18: #{_sparsify_pallas.1} parent=0
    _
  %s5 = ssub.s32 1, %s3
  %s6 = scalar_select 0, %s5, %s3
  %7 = sst [smem:[#allocation2]] %s0
  // Predicated region
  $region2: #{_sparsify_pallas.1} parent=0 // pred_check
    _
  $region3: #{_sparsify_pallas.1} parent=0 // pred_check_branch
    %9 = sbr.rel (0) target = $region5
  $region4: #{_sparsify_pallas.1} parent=0 // pred_region
    _
  $region5: #{_sparsify_pallas.1} parent=0 // pred_fallthru
    _
  // Predicated region
  $region6: #{_sparsify_pallas.1} parent=0 // pred_check
    _
  $region7: #{_sparsify_pallas.1} parent=0 // pred_check_branch
    %11 = sbr.rel (0) target = $region9
  $region8: #{_sparsify_pallas.1} parent=0 // pred_region
    _
  $region9: #{_sparsify_pallas.1} parent=0 // pred_fallthru
    _
  %s12 = sld [smem:[#allocation2]]
  %v13 = vld [vmem:[%s1] sm:$0xff]
  %v14 = vld [vmem:[%s1 + $0x8] sm:$0xff]
  %v15 = vand.u32 2147483647, %v13
  %v16 = vand.u32 2147483647, %v14
  %v17 = vstv %s12
  %vm18 = vcmp.le.f32.partialorder %v15, %v17
  %vm19 = vcmp.le.f32.partialorder %v16, %v17
  %v20 = vsel %vm18, 0.0, %v13
  %v21 = vsel %vm19, 0.0, %v14
  %22 = vst [vmem:[%s2] sm:$0xff] %v20
  %23 = vst [vmem:[%s2 + $0x8] sm:$0xff] %v21
  // Predicated region
  $region10: #{_sparsify_pallas.1} parent=0 // pred_check
    _
  $region11: #{_sparsify_pallas.1} parent=0 // pred_check_branch
    %25 = sbr.rel (0) target = $region13
  $region12: #{_sparsify_pallas.1} parent=0 // pred_region
    _
  $region13: #{_sparsify_pallas.1} parent=0 // pred_fallthru
    _
  // Predicated region
  $region14: #{_sparsify_pallas.1} parent=0 // pred_check
    _
  $region15: #{_sparsify_pallas.1} parent=0 // pred_check_branch
    %27 = sbr.rel (0) target = $region17
  $region16: #{_sparsify_pallas.1} parent=0 // pred_region
    _
  $region17: #{_sparsify_pallas.1} parent=0 // pred_fallthru
    _

</llo_original>
